<compile_context>
chip_gen: v7x
topology: tpu7x:2x2x1
jax: 0.10.0
libtpu: 0.0.40
codegen_flags: <defaults>
</compile_context>

<pallas_src>
import jax
import jax.numpy as jnp
from jax.experimental import pallas as pl
from jax.experimental.pallas import tpu as pltpu


# ---------------------------------------------------------------------------
# Module constants, baked into the kernel body.
# ---------------------------------------------------------------------------
_P1 = ((0.856, 0.3906, 0.777),
       (0.1772, 0.2052, 0.4125),
       (0.7921, 0.8567, 0.3301))
_P2 = ((0.9458, 0.2717, 0.7411),
       (0.5602, 0.7715, 0.1062),
       (0.4664, 0.5055, 0.6179))
_T1 = (-2.6553, 2.4304, 8.3437)
_T2 = (5.346, 2.8367, 1.099)

_LANE = 128                      # TPU lane width
_SUBLANE = 8                     # TPU sublane count
_TILE_QUANTUM = _LANE * _SUBLANE # 1024 samples: smallest (S,128) f32 slab
_TB_MAX = 64 * 1024              # 64K samples/step: S=512, ~3.5 MiB dbl-buffered
_SMALL_B_XLA_PATH = 32 * 1024    # below this, fused XLA beats any kernel


def _round_up(n, m):
    return ((n + m - 1) // m) * m


# ---------------------------------------------------------------------------
# Kernel: packed (4, S, 128) input tile -> (3, S, 128) output tile.
# Rows 0..2 of the input are the x columns, row 3 is the coin-flip mask.
# Pure VPU: 12 lane/sublane-dense selects + 9 mul-adds + 3 bias adds.
# ---------------------------------------------------------------------------
def _projection_kernel(xm_ref, o_ref):
    x0 = xm_ref[0]                 # (S, 128) f32
    x1 = xm_ref[1]
    x2 = xm_ref[2]
    m = xm_ref[3] != 0.0           # (S, 128) bool: True -> use set 1

    for j in range(3):             # static unroll over output columns
        c0 = jnp.where(m, jnp.float32(_P1[0][j]), jnp.float32(_P2[0][j]))
        c1 = jnp.where(m, jnp.float32(_P1[1][j]), jnp.float32(_P2[1][j]))
        c2 = jnp.where(m, jnp.float32(_P1[2][j]), jnp.float32(_P2[2][j]))
        tj = jnp.where(m, jnp.float32(_T1[j]), jnp.float32(_T2[j]))
        o_ref[j] = x0 * c0 + x1 * c1 + x2 * c2 + tj   # full-slab store


# ---------------------------------------------------------------------------
# Pure-JAX reference mirroring the PyTorch forward (also the small-B path).
# ---------------------------------------------------------------------------
def _reference(x, seed):
    p1 = jnp.asarray(_P1, dtype=jnp.float32)
    p2 = jnp.asarray(_P2, dtype=jnp.float32)
    t1 = jnp.asarray(_T1, dtype=jnp.float32)
    t2 = jnp.asarray(_T2, dtype=jnp.float32)
    proj = jnp.where(seed[:, None, None], p1[None], p2[None])
    tran = jnp.where(seed[:, None], t1[None], t2[None])
    y = jnp.squeeze(x[:, None, :] @ proj) + tran
    return y


# ---------------------------------------------------------------------------
# Wrapper
# ---------------------------------------------------------------------------
def projection_forward(x, seed_key, *, force_pallas=False):
    """x: (B, 3) float32.  Returns (y, seed) with y matching the torch module
    (shape (B, 3) for B > 1, (3,) for B == 1)."""
    B = x.shape[0]
    assert x.shape[1] == 3
    x = x.astype(jnp.float32)

    # Glue: per-sample coin flip (torch.rand((B,)) < 0.5), deterministic key.
    seed = jax.random.uniform(seed_key, (B,)) < 0.5
    mask = seed.astype(jnp.float32)                       # (B,)

    # Small-B fast path: the ~30 FLOPs/sample of work fuses into one XLA pass.
    if B < _SMALL_B_XLA_PATH and not force_pallas:
        out = _reference(x, seed)
        if B == 1:
            out = out[0]
        return out, seed

    # Tile selection: batch lives on (sublane, lane); each grid step handles
    # TB samples laid out as an (S, 128) slab with S a multiple of 8.
    TB = min(_round_up(B, _TILE_QUANTUM), _TB_MAX)
    grid_b = pl.cdiv(B, TB)
    B_pad = grid_b * TB
    R = B_pad // _LANE            # total sublane rows across the batch
    S = TB // _LANE               # sublane rows per grid step (multiple of 8)

    # Pack x columns + mask into one lane/sublane-dense (4, R, 128) slab.
    # TODO(synk): the (B,3) <-> (4,R,128) layout plumbing (transpose/pad/
    # reshape) is wrapper-side XLA; for a bandwidth-critical deployment adopt
    # the packed layout as the calling convention end-to-end.
    xm = jnp.concatenate([x.T, mask[None, :]], axis=0)    # (4, B)
    xm = jnp.pad(xm, ((0, 0), (0, B_pad - B)))            # (4, B_pad)
    xm = xm.reshape(4, R, _LANE)                          # (4, R, 128)

    out_packed = pl.pallas_call(
        _projection_kernel,
        out_shape=jax.ShapeDtypeStruct((3, R, _LANE), jnp.float32),
        grid=(grid_b,),
        in_specs=[
            pl.BlockSpec((4, S, _LANE), lambda i: (0, i, 0)),   # packed x+mask
        ],
        out_specs=pl.BlockSpec((3, S, _LANE), lambda i: (0, i, 0)),
        compiler_params=pltpu.CompilerParams(
            dimension_semantics=("parallel",),
            vmem_limit_bytes=32 * 1024 * 1024,  # tiles are ~3.5 MiB; safe on
                                                # v5e/v6e/v7x scoped VMEM
        ),
    )(xm)

    out = out_packed.reshape(3, B_pad)[:, :B].T           # (B, 3)
    if B == 1:
        out = out[0]                                      # torch.squeeze edge case
    return out, seed


if __name__ == "__main__":
    key = jax.random.PRNGKey(0)
    k_x, k_seed = jax.random.split(key)

    B = 8
    x = jax.random.normal(k_x, (B, 3), dtype=jnp.float32)

    # Force the Pallas path so the kernel is exercised at this tiny shape.
    out, seed = projection_forward(x, k_seed, force_pallas=True)
    out = jax.block_until_ready(out)

    ref = _reference(x, seed)
    assert out.shape == (B, 3), out.shape
    assert jnp.allclose(out, ref, atol=1e-5, rtol=1e-5), (out, ref)

    # Also sanity-check a batch spanning more than one sublane-row slab.
    B2 = 3000
    x2 = jax.random.normal(k_x, (B2, 3), dtype=jnp.float32)
    out2, seed2 = projection_forward(x2, k_seed, force_pallas=True)
    out2 = jax.block_until_ready(out2)
    assert out2.shape == (B2, 3), out2.shape
    assert jnp.allclose(out2, _reference(x2, seed2), atol=1e-5, rtol=1e-5)

    print("KERNEL_OK")
</pallas_src>

<mosaic_0001>
module attributes {stable_mosaic.version = 11 : i64} {
  func.func @_projection_kernel(%arg0: i32, %arg1: memref<4x8x128xf32, #tpu.memory_space<vmem>>, %arg2: memref<3x8x128xf32, #tpu.memory_space<vmem>>) attributes {dimension_semantics = [#tpu.dimension_semantics<parallel>], iteration_bounds = array<i64: 1>, scalar_prefetch = 0 : i64, scratch_operands = 0 : i64, tpu.core_type = #tpu.core_type<tc>, window_params = [{transform_indices = @transform_0, window_bounds = array<i64: 4, 8, 128>}, {transform_indices = @transform_1, window_bounds = array<i64: 3, 8, 128>}]} {
    %c0 = arith.constant 0 : index
    %c0_0 = arith.constant 0 : index
    %c0_1 = arith.constant 0 : index
    %0 = vector.load %arg1[%c0, %c0_0, %c0_1] : memref<4x8x128xf32, #tpu.memory_space<vmem>>, vector<1x8x128xf32>
    %1 = vector.shape_cast %0 : vector<1x8x128xf32> to vector<8x128xf32>
    %c1 = arith.constant 1 : index
    %c0_2 = arith.constant 0 : index
    %c0_3 = arith.constant 0 : index
    %2 = vector.load %arg1[%c1, %c0_2, %c0_3] : memref<4x8x128xf32, #tpu.memory_space<vmem>>, vector<1x8x128xf32>
    %3 = vector.shape_cast %2 : vector<1x8x128xf32> to vector<8x128xf32>
    %c2 = arith.constant 2 : index
    %c0_4 = arith.constant 0 : index
    %c0_5 = arith.constant 0 : index
    %4 = vector.load %arg1[%c2, %c0_4, %c0_5] : memref<4x8x128xf32, #tpu.memory_space<vmem>>, vector<1x8x128xf32>
    %5 = vector.shape_cast %4 : vector<1x8x128xf32> to vector<8x128xf32>
    %c3 = arith.constant 3 : index
    %c0_6 = arith.constant 0 : index
    %c0_7 = arith.constant 0 : index
    %6 = vector.load %arg1[%c3, %c0_6, %c0_7] : memref<4x8x128xf32, #tpu.memory_space<vmem>>, vector<1x8x128xf32>
    %7 = vector.shape_cast %6 : vector<1x8x128xf32> to vector<8x128xf32>
    %cst = arith.constant 0.000000e+00 : f32
    %8 = vector.broadcast %cst : f32 to vector<8x128xf32>
    %9 = arith.cmpf one, %7, %8 : vector<8x128xf32>
    %cst_8 = arith.constant 8.560000e-01 : f32
    %cst_9 = arith.constant 9.458000e-01 : f32
    %10 = vector.broadcast %cst_8 : f32 to vector<8x128xf32>
    %11 = vector.broadcast %cst_9 : f32 to vector<8x128xf32>
    %12 = arith.select %9, %10, %11 : vector<8x128xi1>, vector<8x128xf32>
    %cst_10 = arith.constant 1.772000e-01 : f32
    %cst_11 = arith.constant 5.602000e-01 : f32
    %13 = vector.broadcast %cst_10 : f32 to vector<8x128xf32>
    %14 = vector.broadcast %cst_11 : f32 to vector<8x128xf32>
    %15 = arith.select %9, %13, %14 : vector<8x128xi1>, vector<8x128xf32>
    %cst_12 = arith.constant 7.921000e-01 : f32
    %cst_13 = arith.constant 4.664000e-01 : f32
    %16 = vector.broadcast %cst_12 : f32 to vector<8x128xf32>
    %17 = vector.broadcast %cst_13 : f32 to vector<8x128xf32>
    %18 = arith.select %9, %16, %17 : vector<8x128xi1>, vector<8x128xf32>
    %cst_14 = arith.constant -2.655300e+00 : f32
    %cst_15 = arith.constant 5.346000e+00 : f32
    %19 = vector.broadcast %cst_14 : f32 to vector<8x128xf32>
    %20 = vector.broadcast %cst_15 : f32 to vector<8x128xf32>
    %21 = arith.select %9, %19, %20 : vector<8x128xi1>, vector<8x128xf32>
    %22 = arith.mulf %1, %12 : vector<8x128xf32>
    %23 = arith.mulf %3, %15 : vector<8x128xf32>
    %24 = arith.addf %22, %23 : vector<8x128xf32>
    %25 = arith.mulf %5, %18 : vector<8x128xf32>
    %26 = arith.addf %24, %25 : vector<8x128xf32>
    %27 = arith.addf %26, %21 : vector<8x128xf32>
    %c0_16 = arith.constant 0 : index
    %c0_17 = arith.constant 0 : index
    %c0_18 = arith.constant 0 : index
    %28 = vector.load %arg2[%c0_16, %c0_17, %c0_18] : memref<3x8x128xf32, #tpu.memory_space<vmem>>, vector<1x8x128xf32>
    %29 = vector.shape_cast %28 : vector<1x8x128xf32> to vector<8x128xf32>
    %30 = vector.shape_cast %27 : vector<8x128xf32> to vector<1x8x128xf32>
    tpu.vector_store %arg2[%c0_16, %c0_17, %c0_18], %30 {strides = array<i32>} : memref<3x8x128xf32, #tpu.memory_space<vmem>>, vector<1x8x128xf32>,
    %cst_19 = arith.constant 3.906000e-01 : f32
    %cst_20 = arith.constant 2.717000e-01 : f32
    %31 = vector.broadcast %cst_19 : f32 to vector<8x128xf32>
    %32 = vector.broadcast %cst_20 : f32 to vector<8x128xf32>
    %33 = arith.select %9, %31, %32 : vector<8x128xi1>, vector<8x128xf32>
    %cst_21 = arith.constant 2.052000e-01 : f32
    %cst_22 = arith.constant 0.771499991 : f32
    %34 = vector.broadcast %cst_21 : f32 to vector<8x128xf32>
    %35 = vector.broadcast %cst_22 : f32 to vector<8x128xf32>
    %36 = arith.select %9, %34, %35 : vector<8x128xi1>, vector<8x128xf32>
    %cst_23 = arith.constant 8.567000e-01 : f32
    %cst_24 = arith.constant 5.055000e-01 : f32
    %37 = vector.broadcast %cst_23 : f32 to vector<8x128xf32>
    %38 = vector.broadcast %cst_24 : f32 to vector<8x128xf32>
    %39 = arith.select %9, %37, %38 : vector<8x128xi1>, vector<8x128xf32>
    %cst_25 = arith.constant 2.430400e+00 : f32
    %cst_26 = arith.constant 2.836700e+00 : f32
    %40 = vector.broadcast %cst_25 : f32 to vector<8x128xf32>
    %41 = vector.broadcast %cst_26 : f32 to vector<8x128xf32>
    %42 = arith.select %9, %40, %41 : vector<8x128xi1>, vector<8x128xf32>
    %43 = arith.mulf %1, %33 : vector<8x128xf32>
    %44 = arith.mulf %3, %36 : vector<8x128xf32>
    %45 = arith.addf %43, %44 : vector<8x128xf32>
    %46 = arith.mulf %5, %39 : vector<8x128xf32>
    %47 = arith.addf %45, %46 : vector<8x128xf32>
    %48 = arith.addf %47, %42 : vector<8x128xf32>
    %c1_27 = arith.constant 1 : index
    %c0_28 = arith.constant 0 : index
    %c0_29 = arith.constant 0 : index
    %49 = vector.load %arg2[%c1_27, %c0_28, %c0_29] : memref<3x8x128xf32, #tpu.memory_space<vmem>>, vector<1x8x128xf32>
    %50 = vector.shape_cast %49 : vector<1x8x128xf32> to vector<8x128xf32>
    %51 = vector.shape_cast %48 : vector<8x128xf32> to vector<1x8x128xf32>
    tpu.vector_store %arg2[%c1_27, %c0_28, %c0_29], %51 {strides = array<i32>} : memref<3x8x128xf32, #tpu.memory_space<vmem>>, vector<1x8x128xf32>,
    %cst_30 = arith.constant 7.770000e-01 : f32
    %cst_31 = arith.constant 7.411000e-01 : f32
    %52 = vector.broadcast %cst_30 : f32 to vector<8x128xf32>
    %53 = vector.broadcast %cst_31 : f32 to vector<8x128xf32>
    %54 = arith.select %9, %52, %53 : vector<8x128xi1>, vector<8x128xf32>
    %cst_32 = arith.constant 4.125000e-01 : f32
    %cst_33 = arith.constant 1.062000e-01 : f32
    %55 = vector.broadcast %cst_32 : f32 to vector<8x128xf32>
    %56 = vector.broadcast %cst_33 : f32 to vector<8x128xf32>
    %57 = arith.select %9, %55, %56 : vector<8x128xi1>, vector<8x128xf32>
    %cst_34 = arith.constant 3.301000e-01 : f32
    %cst_35 = arith.constant 6.179000e-01 : f32
    %58 = vector.broadcast %cst_34 : f32 to vector<8x128xf32>
    %59 = vector.broadcast %cst_35 : f32 to vector<8x128xf32>
    %60 = arith.select %9, %58, %59 : vector<8x128xi1>, vector<8x128xf32>
    %cst_36 = arith.constant 8.343700e+00 : f32
    %cst_37 = arith.constant 1.099000e+00 : f32
    %61 = vector.broadcast %cst_36 : f32 to vector<8x128xf32>
    %62 = vector.broadcast %cst_37 : f32 to vector<8x128xf32>
    %63 = arith.select %9, %61, %62 : vector<8x128xi1>, vector<8x128xf32>
    %64 = arith.mulf %1, %54 : vector<8x128xf32>
    %65 = arith.mulf %3, %57 : vector<8x128xf32>
    %66 = arith.addf %64, %65 : vector<8x128xf32>
    %67 = arith.mulf %5, %60 : vector<8x128xf32>
    %68 = arith.addf %66, %67 : vector<8x128xf32>
    %69 = arith.addf %68, %63 : vector<8x128xf32>
    %c2_38 = arith.constant 2 : index
    %c0_39 = arith.constant 0 : index
    %c0_40 = arith.constant 0 : index
    %70 = vector.load %arg2[%c2_38, %c0_39, %c0_40] : memref<3x8x128xf32, #tpu.memory_space<vmem>>, vector<1x8x128xf32>
    %71 = vector.shape_cast %70 : vector<1x8x128xf32> to vector<8x128xf32>
    %72 = vector.shape_cast %69 : vector<8x128xf32> to vector<1x8x128xf32>
    tpu.vector_store %arg2[%c2_38, %c0_39, %c0_40], %72 {strides = array<i32>} : memref<3x8x128xf32, #tpu.memory_space<vmem>>, vector<1x8x128xf32>,
    return
  }
  func.func @transform_0(%arg0: i32) -> (i32, i32, i32) {
    %c0_i32 = arith.constant 0 : i32
    %c0_i32_0 = arith.constant 0 : i32
    %c0_i32_1 = arith.constant 0 : i32
    return %c0_i32, %arg0, %c0_i32_0 : i32, i32, i32
  }
  func.func @transform_1(%arg0: i32) -> (i32, i32, i32) {
    %c0_i32 = arith.constant 0 : i32
    %c0_i32_0 = arith.constant 0 : i32
    %c0_i32_1 = arith.constant 0 : i32
    return %c0_i32, %arg0, %c0_i32_0 : i32, i32, i32
  }
}

</mosaic_0001>

<llo_original>
// kernel: tpu_custom_call.1
$region0: #{tpu_custom_call.1}
  #allocation0 [shape = 'u32[]', space=smem, size = 0x4, offset = 0x4, fixed_abs, tag = 'smem constant byte address 0x4 - core index']
  #allocation1 [shape = 'u32[144,128]{1,0:T(1,128)}', space=vmem, size = 0x12000, scoped, tag = 'internal scratch']
  %s0 = inlined_call_operand.hbm [shape: f32[4,8,128], index: 0, kind: input, shape index: {}]
  %s1 = inlined_call_operand.hbm [shape: f32[3,8,128], index: 1, kind: output, shape index: {}]
  %s2 = sld [smem:[#allocation0]]
  $region18: #{tpu_custom_call.1} parent=0
    _
  %s4 = ssub.s32 1, %s2
  %s5 = scalar_select 0, %s4, %s2
  $region1: #{tpu_custom_call.1} parent=0
    #allocation2 [shape = 'u8[16384]{0}', space=vmem, size = 0x4000, scoped, tag = 'input window, operand 0, single buffered']
    #allocation3 [shape = 's32[1]{0}', space=sflag, size = 0x4, scoped, tag = 'scoped memory for tpu_custom_call.1']
    #allocation4 [shape = 's32[1]{0}', space=sflag, size = 0x4, scoped, tag = 'scoped memory for tpu_custom_call.1']
    #allocation5 [shape = 'u8[12288]{0}', space=vmem, size = 0x3000, scoped, tag = 'output window, operand 0, single buffered']
    %6 = vsyncpa [#allocation3], 0
    %7 = vsyncpa [#allocation4], 0
    // Predicated region
    $region2: #{tpu_custom_call.1} parent=1 // pred_check
      _
    $region3: #{tpu_custom_call.1} parent=1 // pred_check_branch
      %9 = sbr.rel (0) target = $region5
    $region4: #{tpu_custom_call.1} parent=1 // pred_region
      %s11 = ssub.s32 512, 512
      %12 = vsyncadd [#allocation3], %s11
      %s13 = sshll.u32 [#allocation2], 4
      %s14 = int_to_ptr.vmem [resolvable:$true] %s13
      %19 = dma.hbm_to_vmem [thread:$0]  %s0, 512, %s14, [#allocation3], 128, 128, 8
    $region5: #{tpu_custom_call.1} parent=1 // pred_fallthru
      _
    // Predicated region
    $region6: #{tpu_custom_call.1} parent=1 // pred_check
      _
    $region7: #{tpu_custom_call.1} parent=1 // pred_check_branch
      %21 = sbr.rel (0) target = $region9
    $region8: #{tpu_custom_call.1} parent=1 // pred_region
      %22 = dma.done [#allocation3], 512
    $region9: #{tpu_custom_call.1} parent=1 // pred_fallthru
      _
    %v23 = vld [vmem:[#allocation2] sm:$0xff]
    %s24 = scalar_lea.vmem [#allocation2], 8
    %v25 = vld [vmem:[%s24] sm:$0xff]
    %s26 = scalar_lea.vmem [#allocation2], 16
    %v27 = vld [vmem:[%s26] sm:$0xff]
    %s28 = scalar_lea.vmem [#allocation2], 24
    %v29 = vld [vmem:[%s28] sm:$0xff]
    %vm30 = vcmp.ne.f32.partialorder %v29, 0.0
    %v31 = vsel %vm30, 0.856, 0.9458
    %v32 = vsel %vm30, 0.1772, 0.5602
    %v33 = vsel %vm30, 0.7921, 0.4664
    %v34 = vsel %vm30, -2.6553, 5.346
    %v35 = vmul.f32 %v23, %v31
    %v36 = vmul.f32 %v25, %v32
    %v37 = vadd.f32 %v35, %v36
    %v38 = vmul.f32 %v27, %v33
    %v39 = vadd.f32 %v37, %v38
    %v40 = vadd.f32 %v39, %v34
    %41 = vst [vmem:[#allocation5] sm:$0xff] %v40
    %v42 = vsel %vm30, 0.3906, 0.2717
    %v43 = vsel %vm30, 0.2052, 0.7715
    %v44 = vsel %vm30, 0.8567, 0.5055
    %v45 = vsel %vm30, 2.4304, 2.8367
    %v46 = vmul.f32 %v23, %v42
    %v47 = vmul.f32 %v25, %v43
    %v48 = vadd.f32 %v46, %v47
    %v49 = vmul.f32 %v27, %v44
    %v50 = vadd.f32 %v48, %v49
    %v51 = vadd.f32 %v50, %v45
    %s52 = scalar_lea.vmem [#allocation5], 8
    %53 = vst [vmem:[%s52] sm:$0xff] %v51
    %v54 = vsel %vm30, 0.777, 0.7411
    %v55 = vsel %vm30, 0.4125, 0.1062
    %v56 = vsel %vm30, 0.3301, 0.6179
    %v57 = vsel %vm30, 8.3437, 1.099
    %v58 = vmul.f32 %v23, %v54
    %v59 = vmul.f32 %v25, %v55
    %v60 = vadd.f32 %v58, %v59
    %v61 = vmul.f32 %v27, %v56
    %v62 = vadd.f32 %v60, %v61
    %v63 = vadd.f32 %v62, %v57
    %s64 = scalar_lea.vmem [#allocation5], 16
    %65 = vst [vmem:[%s64] sm:$0xff] %v63
    // Predicated region
    $region10: #{tpu_custom_call.1} parent=1 // pred_check
      _
    $region11: #{tpu_custom_call.1} parent=1 // pred_check_branch
      %67 = sbr.rel (0) target = $region13
    $region12: #{tpu_custom_call.1} parent=1 // pred_region
      %s69 = ssub.s32 384, 384
      %70 = vsyncadd [#allocation4], %s69
      %s71 = sshll.u32 [#allocation5], 4
      %s72 = int_to_ptr.vmem [resolvable:$true] %s71
      %77 = dma.vmem_to_hbm [thread:$0]  %s72, 384, %s1, [#allocation4], 128, 128, 8
    $region13: #{tpu_custom_call.1} parent=1 // pred_fallthru
      _
    // Predicated region
    $region14: #{tpu_custom_call.1} parent=1 // pred_check
      _
    $region15: #{tpu_custom_call.1} parent=1 // pred_check_branch
      %79 = sbr.rel (0) target = $region17
    $region16: #{tpu_custom_call.1} parent=1 // pred_region
      %80 = dma.done [#allocation4], 384
    $region17: #{tpu_custom_call.1} parent=1 // pred_fallthru
      _
    %81 = vsyncpa [#allocation3], 1
    %82 = vsyncpa [#allocation4], 1

</llo_original>
